<compile_context>
chip_gen: v7x
topology: tpu7x:2x2x1
jax: 0.10.0
libtpu: 0.0.40
codegen_flags: <defaults>
</compile_context>

<pallas_src>
import jax
import jax.numpy as jnp
from jax.experimental import pallas as pl
from jax.experimental.pallas import tpu as pltpu

_LANE_CAP = 512 * 128  # max lane width (65536) of the internal 2D view


def _swish_kernel(x_ref, o_ref):
    # Compute in f32 regardless of storage dtype; exp sits on the EUP slot and
    # the multiply on the VPU, both far below the HBM roofline.
    x = x_ref[...].astype(jnp.float32)
    o_ref[...] = (x * jax.nn.sigmoid(x)).astype(o_ref.dtype)


def _round_up(n, m):
    return ((n + m - 1) // m) * m


def _sublane_pack(dtype):
    # Sub-32-bit dtypes pack along sublanes; block rows stay a multiple of the
    # packing factor so tiles are full vregs (ragged last block is fine).
    return {4: 8, 2: 16, 1: 32}.get(jnp.dtype(dtype).itemsize, 8)


def _choose_lane_width(n):
    """Largest multiple of 128 that divides n and is <= _LANE_CAP (requires n % 128 == 0)."""
    m = n // 128
    cap = min(m, _LANE_CAP // 128)
    for d in range(cap, 0, -1):
        if m % d == 0:
            return d * 128
    return 128


def _tpu_config():
    vmem = None
    try:
        vmem = pltpu.get_tpu_info().vmem_capacity_bytes
    except Exception:
        pass
    if vmem is not None and vmem > (64 << 20):
        # v5e / v6e: 128 MiB VMEM, single TensorCore per chip -> no forced split,
        # bigger tiles to push per-step overhead below ~2%.
        return {"target_bytes": 16 << 20, "vmem_limit": 96 << 20,
                "force_even_steps": False}
    # v7x (64 MiB VMEM, 2 TensorCores) or unknown: 8 MiB/buffer keeps
    # 2-in + 2-out buffers ~32 MiB, with headroom under the 48 MiB limit.
    return {"target_bytes": 8 << 20, "vmem_limit": 48 << 20,
            "force_even_steps": True}


def _choose_block_rows(rows, cols, dtype, target_bytes, force_even_steps):
    itemsize = jnp.dtype(dtype).itemsize
    sublane = _sublane_pack(dtype)
    row_bytes = cols * itemsize
    br = max(sublane, (target_bytes // row_bytes) // sublane * sublane)
    if br >= rows:
        br = rows  # single full-array block (legal: equals the full dim)
        if (force_even_steps and rows >= 2 * sublane
                and rows * row_bytes >= (1 << 21)):
            # Split large single-block cases so both TensorCores get work.
            br = _round_up(pl.cdiv(rows, 2), sublane)
    elif force_even_steps:
        steps = pl.cdiv(rows, br)
        if steps % 2 == 1:
            # Nudge to an even step count for balanced 2-core sharding.
            br2 = _round_up(pl.cdiv(rows, steps + 1), sublane)
            if br2 >= sublane and pl.cdiv(rows, br2) % 2 == 0:
                br = br2
    return br


def swish(x, *, min_pallas_bytes=1 << 20, donate=False):
    """Elementwise Swish. Accepts any rank; internally flattens to a lane-dense 2D view."""
    orig_shape = x.shape
    n = int(x.size)
    itemsize = jnp.dtype(x.dtype).itemsize
    nbytes = n * itemsize
    if n == 0 or nbytes < min_pallas_bytes:
        # Launch + DMA-setup overhead dominates tiny inputs; let XLA fuse it.
        return x * jax.nn.sigmoid(x)

    cfg = _tpu_config()

    flat = x.reshape(-1)
    if n % 128 == 0:
        c_lane = _choose_lane_width(n)
        pad = 0
    else:
        # Misaligned element count: pad the flat view up to a lane-dense width.
        c_lane = min(_LANE_CAP, _round_up(n, 128))
        pad = _round_up(n, c_lane) - n
        flat = jnp.pad(flat, (0, pad))
    total = n + pad
    rows = total // c_lane
    x2 = flat.reshape(rows, c_lane)

    br = _choose_block_rows(rows, c_lane, x.dtype, cfg["target_bytes"],
                            cfg["force_even_steps"])
    grid = (pl.cdiv(rows, br),)

    cost = pl.CostEstimate(
        flops=4 * total,
        transcendentals=total,
        bytes_accessed=2 * total * itemsize,
    )

    out2 = pl.pallas_call(
        _swish_kernel,
        out_shape=jax.ShapeDtypeStruct((rows, c_lane), x.dtype),
        grid_spec=pltpu.PrefetchScalarGridSpec(
            num_scalar_prefetch=0,
            grid=grid,
            # Tile only the row dim; the full lane-dense width per block keeps
            # stores unmasked and DMAs large and contiguous.
            in_specs=[pl.BlockSpec((br, c_lane), lambda i: (i, 0))],
            out_specs=pl.BlockSpec((br, c_lane), lambda i: (i, 0)),
        ),
        compiler_params=pltpu.CompilerParams(
            dimension_semantics=("parallel",),
            vmem_limit_bytes=cfg["vmem_limit"],
        ),
        cost_estimate=cost,
        input_output_aliases=({0: 0} if donate else {}),
    )(x2)

    out = out2.reshape(-1)
    if pad:
        out = out[:n]
    return out.reshape(orig_shape)


if __name__ == "__main__":
    key = jax.random.PRNGKey(0)
    k1, k2, k3, k4 = jax.random.split(key, 4)

    def ref(v):
        vf = v.astype(jnp.float32)
        return (vf * jax.nn.sigmoid(vf)).astype(v.dtype)

    # (batch, hidden) as in the SAC dynamics-model MLP; force the Pallas path
    # (the default heuristic routes such tiny tensors to fused XLA).
    x = jax.random.normal(k1, (16, 256), dtype=jnp.float32)
    y = swish(x, min_pallas_bytes=0)
    jax.block_until_ready(y)
    assert y.shape == x.shape and y.dtype == x.dtype
    assert float(jnp.max(jnp.abs(y - ref(x)))) < 1e-6

    # Higher-rank input (elementwise op is rank-agnostic).
    x4 = jax.random.normal(k2, (2, 4, 16, 16), dtype=jnp.float32)
    y4 = swish(x4, min_pallas_bytes=0)
    jax.block_until_ready(y4)
    assert y4.shape == x4.shape
    assert float(jnp.max(jnp.abs(y4 - ref(x4)))) < 1e-6

    # Ragged rows + bf16: exercises the misaligned (pad) path and f32 math.
    xb = jax.random.normal(k3, (13, 200), dtype=jnp.bfloat16)
    yb = swish(xb, min_pallas_bytes=0)
    jax.block_until_ready(yb)
    assert yb.shape == xb.shape and yb.dtype == xb.dtype
    err = float(jnp.max(jnp.abs(yb.astype(jnp.float32) - ref(xb).astype(jnp.float32))))
    assert err < 2e-2

    # Lane-aligned tensor big enough to take the Pallas path by default and
    # (on 2-TensorCore chips) to be split evenly across both cores.
    xl = jax.random.normal(k4, (1024, 1024), dtype=jnp.float32)
    yl = swish(xl)
    jax.block_until_ready(yl)
    assert float(jnp.max(jnp.abs(yl - ref(xl)))) < 1e-6

    # Default small-input fallback path (fused XLA), for completeness.
    ys = swish(x)
    jax.block_until_ready(ys)
    assert float(jnp.max(jnp.abs(ys - ref(x)))) < 1e-6

    print("KERNEL_OK")
</pallas_src>

<mosaic_0001>
module attributes {stable_mosaic.version = 11 : i64} {
  func.func @_swish_kernel(%arg0: i32, %arg1: memref<1x4096xf32, #tpu.memory_space<vmem>>, %arg2: memref<1x4096xf32, #tpu.memory_space<vmem>>) attributes {dimension_semantics = [#tpu.dimension_semantics<parallel>], iteration_bounds = array<i64: 1>, scalar_prefetch = 0 : i64, scratch_operands = 0 : i64, tpu.core_type = #tpu.core_type<tc>, window_params = [{transform_indices = @transform_0, window_bounds = array<i64: 1, 4096>}, {transform_indices = @transform_1, window_bounds = array<i64: 1, 4096>}]} {
    %c0 = arith.constant 0 : index
    %c0_0 = arith.constant 0 : index
    %0 = vector.load %arg1[%c0, %c0_0] : memref<1x4096xf32, #tpu.memory_space<vmem>>, vector<1x4096xf32>
    %1 = arith.negf %0 : vector<1x4096xf32>
    %2 = math.exp %1 : vector<1x4096xf32>
    %cst = arith.constant 1.000000e+00 : f32
    %3 = vector.broadcast %cst : f32 to vector<1x4096xf32>
    %4 = arith.addf %3, %2 : vector<1x4096xf32>
    %5 = arith.divf %3, %4 : vector<1x4096xf32>
    %6 = arith.mulf %0, %5 : vector<1x4096xf32>
    %c0_1 = arith.constant 0 : index
    %c0_2 = arith.constant 0 : index
    %7 = vector.load %arg2[%c0_1, %c0_2] : memref<1x4096xf32, #tpu.memory_space<vmem>>, vector<1x4096xf32>
    tpu.vector_store %arg2[%c0_1, %c0_2], %6 {strides = array<i32>} : memref<1x4096xf32, #tpu.memory_space<vmem>>, vector<1x4096xf32>,
    return
  }
  func.func @transform_0(%arg0: i32) -> (i32, i32) {
    %c0_i32 = arith.constant 0 : i32
    %c0_i32_0 = arith.constant 0 : i32
    return %arg0, %c0_i32 : i32, i32
  }
  func.func @transform_1(%arg0: i32) -> (i32, i32) {
    %c0_i32 = arith.constant 0 : i32
    %c0_i32_0 = arith.constant 0 : i32
    return %arg0, %c0_i32 : i32, i32
  }
}

</mosaic_0001>

<llo_original>
// kernel: tpu_custom_call.1
$region0: #{tpu_custom_call.1}
  #allocation0 [shape = 'u32[]', space=smem, size = 0x4, offset = 0x4, fixed_abs, tag = 'smem constant byte address 0x4 - core index']
  #allocation1 [shape = 'u32[144,128]{1,0:T(1,128)}', space=vmem, size = 0x12000, scoped, tag = 'internal scratch']
  %s0 = inlined_call_operand.hbm [shape: f32[1,4096], index: 0, kind: input, shape index: {}]
  %s1 = inlined_call_operand.hbm [shape: f32[1,4096], index: 1, kind: output, shape index: {}]
  %s2 = sld [smem:[#allocation0]]
  $region18: #{tpu_custom_call.1} parent=0
    _
  %s4 = ssub.s32 1, %s2
  %s5 = scalar_select 0, %s4, %s2
  $region1: #{tpu_custom_call.1} parent=0
    #allocation2 [shape = 'u8[16384]{0}', space=vmem, size = 0x4000, scoped, tag = 'input window, operand 0, single buffered']
    #allocation3 [shape = 's32[1]{0}', space=sflag, size = 0x4, scoped, tag = 'scoped memory for tpu_custom_call.1']
    #allocation4 [shape = 's32[1]{0}', space=sflag, size = 0x4, scoped, tag = 'scoped memory for tpu_custom_call.1']
    #allocation5 [shape = 'u8[16384]{0}', space=vmem, size = 0x4000, scoped, tag = 'output window, operand 0, single buffered']
    %6 = vsyncpa [#allocation3], 0
    %7 = vsyncpa [#allocation4], 0
    // Predicated region
    $region2: #{tpu_custom_call.1} parent=1 // pred_check
      _
    $region3: #{tpu_custom_call.1} parent=1 // pred_check_branch
      %9 = sbr.rel (0) target = $region5
    $region4: #{tpu_custom_call.1} parent=1 // pred_region
      %s11 = ssub.s32 512, 512
      %12 = vsyncadd [#allocation3], %s11
      %s14 = sshll.u32 [#allocation2], 4
      %s15 = int_to_ptr.vmem [resolvable:$true] %s14
      %17 = dma.hbm_to_vmem [thread:$0]  %s0, 512, %s15, [#allocation3]
    $region5: #{tpu_custom_call.1} parent=1 // pred_fallthru
      _
    // Predicated region
    $region6: #{tpu_custom_call.1} parent=1 // pred_check
      _
    $region7: #{tpu_custom_call.1} parent=1 // pred_check_branch
      %19 = sbr.rel (0) target = $region9
    $region8: #{tpu_custom_call.1} parent=1 // pred_region
      %20 = dma.done [#allocation3], 512
    $region9: #{tpu_custom_call.1} parent=1 // pred_fallthru
      _
    %v21 = vld [vmem:[#allocation2] sm:$0xff]
    %v22 = vld [vmem:[#allocation2 + $0x8] sm:$0xff]
    %v23 = vld [vmem:[#allocation2 + $0x10] sm:$0xff]
    %v24 = vld [vmem:[#allocation2 + $0x18] sm:$0xff]
    %v25 = vxor.u32 %v21, 2147483648
    %v26 = vxor.u32 %v22, 2147483648
    %v27 = vxor.u32 %v23, 2147483648
    %v28 = vxor.u32 %v24, 2147483648
    %v29 = vmul.f32 %v25, 1.442695
    %v30 = vpow.pop %v29
    %v31 = vmul.f32 %v26, 1.442695
    %v32 = vpow.pop %v31
    %v33 = vmul.f32 %v27, 1.442695
    %v34 = vpow.pop %v33
    %v35 = vmul.f32 %v28, 1.442695
    %v36 = vpow.pop %v35
    %v37 = vadd.f32 %v30, 1.0
    %v38 = vadd.f32 %v32, 1.0
    %v39 = vadd.f32 %v34, 1.0
    %v40 = vadd.f32 %v36, 1.0
    %v41 = vrcp.pop %v37
    %v42 = vmul.f32 1.0, %v41
    %v43 = vrcp.pop %v38
    %v44 = vmul.f32 1.0, %v43
    %v45 = vrcp.pop %v39
    %v46 = vmul.f32 1.0, %v45
    %v47 = vrcp.pop %v40
    %v48 = vmul.f32 1.0, %v47
    %v49 = vmul.f32 %v21, %v42
    %v50 = vmul.f32 %v22, %v44
    %v51 = vmul.f32 %v23, %v46
    %v52 = vmul.f32 %v24, %v48
    %53 = vst [vmem:[#allocation5] sm:$0xff] %v49
    %54 = vst [vmem:[#allocation5 + $0x8] sm:$0xff] %v50
    %55 = vst [vmem:[#allocation5 + $0x10] sm:$0xff] %v51
    %56 = vst [vmem:[#allocation5 + $0x18] sm:$0xff] %v52
    // Predicated region
    $region10: #{tpu_custom_call.1} parent=1 // pred_check
      _
    $region11: #{tpu_custom_call.1} parent=1 // pred_check_branch
      %58 = sbr.rel (0) target = $region13
    $region12: #{tpu_custom_call.1} parent=1 // pred_region
      %s60 = ssub.s32 512, 512
      %61 = vsyncadd [#allocation4], %s60
      %s63 = sshll.u32 [#allocation5], 4
      %s64 = int_to_ptr.vmem [resolvable:$true] %s63
      %66 = dma.vmem_to_hbm [thread:$0]  %s64, 512, %s1, [#allocation4]
    $region13: #{tpu_custom_call.1} parent=1 // pred_fallthru
      _
    // Predicated region
    $region14: #{tpu_custom_call.1} parent=1 // pred_check
      _
    $region15: #{tpu_custom_call.1} parent=1 // pred_check_branch
      %68 = sbr.rel (0) target = $region17
    $region16: #{tpu_custom_call.1} parent=1 // pred_region
      %69 = dma.done [#allocation4], 512
    $region17: #{tpu_custom_call.1} parent=1 // pred_fallthru
      _
    %70 = vsyncpa [#allocation3], 1
    %71 = vsyncpa [#allocation4], 1

</llo_original>
